<compile_context>
chip_gen: v7x
topology: tpu7x:2x2x1
jax: 0.10.0
libtpu: 0.0.40
codegen_flags: <defaults>
</compile_context>

<pallas_src>
import functools

import jax
import jax.numpy as jnp
import numpy as np
from jax import lax
from jax.experimental import pallas as pl
from jax.experimental.pallas import tpu as pltpu


def _round_up(n, m):
    return ((n + m - 1) // m) * m


def _vmem_capacity_bytes():
    try:
        return int(pltpu.get_tpu_info().vmem_capacity_bytes)
    except Exception:
        return 64 << 20  # conservative fallback: v7x per-TensorCore VMEM


def _ff_kernel(x_ref, w1a_ref, w1b_ref, b1a_ref, b1b_ref, w2_ref, b2_ref,
               o_ref, *scratch, approximate_gelu):
    """Grid = (row_tiles, hidden_tiles).

    For each hidden tile j:   a = x @ W1a[:, j] + b1a[j]     (f32 accum)
                              g = x @ W1b[:, j] + b1b[j]     (f32 accum)
                              h = a * gelu(g)                (f32, cast to bf16)
                              acc += h @ W2[j, :]            (f32 accum)
    acc is initialized with b2 at j == 0.  Dropout(p=0.0) is the identity.
    If no scratch is given, `acc` IS the (f32) output block, which stays
    resident across the hidden axis (its block index only depends on i).
    """
    acc_ref = scratch[0] if scratch else o_ref
    j = pl.program_id(1)

    @pl.when(j == 0)
    def _():
        # Initialize the accumulator with the second-layer bias (hoists the add).
        acc_ref[...] = jnp.broadcast_to(b2_ref[...], acc_ref.shape)

    x = x_ref[...]  # (tm, D_pad) in compute dtype (bf16)

    a = jnp.dot(x, w1a_ref[...], preferred_element_type=jnp.float32) + b1a_ref[...]
    g = jnp.dot(x, w1b_ref[...], preferred_element_type=jnp.float32) + b1b_ref[...]

    if approximate_gelu:
        # tanh-approx GELU: transcendental routed through the EUP slot.
        c = jnp.float32(0.7978845608028654)  # sqrt(2/pi)
        gelu_g = 0.5 * g * (1.0 + jnp.tanh(c * (g + 0.044715 * g * g * g)))
    else:
        # Exact erf GELU (matches torch.nn.functional.gelu default).
        gelu_g = 0.5 * g * (1.0 + lax.erf(g * jnp.float32(0.7071067811865475)))

    h = (a * gelu_g).astype(w2_ref.dtype)  # bf16 operand for the second MXU pass
    acc_ref[...] += jnp.dot(h, w2_ref[...], preferred_element_type=jnp.float32)

    if scratch:  # non-f32 output: cast + store the f32 accumulator at the end
        @pl.when(j == pl.num_programs(1) - 1)
        def _():
            o_ref[...] = acc_ref[...].astype(o_ref.dtype)


def make_feed_forward(w1, b1, w2, b2, *, row_tile=512, hidden_tile=256,
                      approximate_gelu=True, compute_dtype=jnp.bfloat16):
    """Prepare weights once (split / cast / pad) and return apply(x) -> y.

    w1: (D, 2*H), b1: (2*H,), w2: (H, D), b2: (D,).  apply(x) with x: (B, S, D).
    """
    D, two_h = w1.shape
    H = two_h // 2
    assert w1.shape == (D, 2 * H) and b1.shape == (2 * H,)
    assert w2.shape == (H, D) and b2.shape == (D,)

    cbytes = np.dtype(compute_dtype).itemsize
    D_pad = _round_up(D, 128)

    vmem_cap = _vmem_capacity_bytes()
    vmem_budget = int(0.85 * vmem_cap)  # headroom for Mosaic internal scratch

    def footprint(tm, th, acc_scratch, obytes):
        # Exact double-buffered footprint of one grid step.
        return (2 * tm * D_pad * cbytes                 # x tile        (x2 buffers)
                + 2 * 3 * D_pad * th * cbytes           # W1a, W1b, W2  (x2 buffers)
                + 2 * (2 * th + D_pad) * 4              # f32 biases    (x2 buffers)
                + 2 * tm * D_pad * obytes               # output tile   (x2 buffers)
                + (tm * D_pad * 4 if acc_scratch else 0))  # f32 accumulator

    # ---- pick (tm_cap, th): shrink th before tm (bigger row tiles amortize
    #      weight streaming; th > 256 gains little on any generation). ----
    th = min(_round_up(hidden_tile, 128), _round_up(H, 128))
    tm = _round_up(row_tile, 16)
    while footprint(tm, th, False, 4) > vmem_budget:
        if th > 256:
            th = _round_up(th // 2, 128)
        elif tm > 128:
            tm = _round_up(tm // 2, 16)
        elif th > 128:
            th = 128
        elif tm > 16:
            tm = _round_up(tm // 2, 16)
        else:
            break
    tm_cap = max(tm, 16)
    H_pad = _round_up(H, th)

    # ---- pre-split / pre-cast / pre-pad weights ONCE (out of the hot path) ----
    def pad2(a, r, c):
        return jnp.pad(a, ((0, r - a.shape[0]), (0, c - a.shape[1])))

    w1a_p = pad2(w1[:, :H].astype(compute_dtype), D_pad, H_pad)
    w1b_p = pad2(w1[:, H:].astype(compute_dtype), D_pad, H_pad)
    w2_p = pad2(w2.astype(compute_dtype), H_pad, D_pad)
    b1a_p = pad2(b1[:H].reshape(1, H).astype(jnp.float32), 1, H_pad)
    b1b_p = pad2(b1[H:].reshape(1, H).astype(jnp.float32), 1, H_pad)
    b2_p = pad2(b2.reshape(1, D).astype(jnp.float32), 1, D_pad)

    def apply(x):
        B, S, d = x.shape
        assert d == D
        n_rows = B * S
        out_dtype = x.dtype
        obytes = np.dtype(out_dtype).itemsize
        acc_in_out = np.dtype(out_dtype) == np.dtype(np.float32)

        # Row tile: multiple of 16 (bf16 sublane packing); keep >= 2 row tiles
        # when possible so v7x's second TensorCore gets work.
        tm = min(tm_cap, _round_up(n_rows, 16))
        if n_rows > 16:
            tm = min(tm, _round_up((n_rows + 1) // 2, 16))
        tm = max(tm, 16)
        while footprint(tm, th, not acc_in_out, obytes) > vmem_budget and tm > 16:
            tm = max(16, _round_up(tm // 2, 16))

        rows_pad = _round_up(n_rows, tm)
        grid = (rows_pad // tm, H_pad // th)
        n_row_tiles = grid[0]

        x2 = jnp.pad(x.reshape(n_rows, D).astype(compute_dtype),
                     ((0, rows_pad - n_rows), (0, D_pad - D)))

        fp = footprint(tm, th, not acc_in_out, obytes)
        vmem_limit = int(min(max(int(fp * 1.15), 32 << 20), vmem_cap))

        # Advisory cost estimate: weights are re-streamed once per ROW TILE.
        flops = 6 * rows_pad * D_pad * H_pad
        transcendentals = rows_pad * H_pad
        bytes_accessed = int(
            rows_pad * D_pad * cbytes                        # x (once per row tile)
            + n_row_tiles * 3 * D_pad * H_pad * cbytes       # W1a, W1b, W2 per row tile
            + n_row_tiles * (2 * H_pad + D_pad) * 4          # biases per row tile
            + rows_pad * D_pad * obytes)                     # output writeback

        scratch_shapes = [] if acc_in_out else [pltpu.VMEM((tm, D_pad), jnp.float32)]

        # NOTE: if profiling still shows exposed weight DMA at row-tile
        # boundaries on v5e/v6e, add pipeline_mode=pl.Buffered(3) to the three
        # weight BlockSpecs (v7x usually lacks the VMEM headroom for it).
        out_pad = pl.pallas_call(
            functools.partial(_ff_kernel, approximate_gelu=approximate_gelu),
            out_shape=jax.ShapeDtypeStruct((rows_pad, D_pad), out_dtype),
            grid_spec=pltpu.PrefetchScalarGridSpec(
                num_scalar_prefetch=0,
                grid=grid,
                in_specs=[
                    pl.BlockSpec((tm, D_pad), lambda i, j: (i, 0)),   # x rows
                    pl.BlockSpec((D_pad, th), lambda i, j: (0, j)),   # W1 value half
                    pl.BlockSpec((D_pad, th), lambda i, j: (0, j)),   # W1 gate half
                    pl.BlockSpec((1, th), lambda i, j: (0, j)),       # b1 value half
                    pl.BlockSpec((1, th), lambda i, j: (0, j)),       # b1 gate half
                    pl.BlockSpec((th, D_pad), lambda i, j: (j, 0)),   # W2 tile
                    pl.BlockSpec((1, D_pad), lambda i, j: (0, 0)),    # b2
                ],
                out_specs=pl.BlockSpec((tm, D_pad), lambda i, j: (i, 0)),
                scratch_shapes=scratch_shapes,
            ),
            compiler_params=pltpu.CompilerParams(
                dimension_semantics=("parallel", "arbitrary"),
                vmem_limit_bytes=vmem_limit,
            ),
            cost_estimate=pl.CostEstimate(
                flops=flops,
                transcendentals=transcendentals,
                bytes_accessed=bytes_accessed,
            ),
        )(x2, w1a_p, w1b_p, b1a_p, b1b_p, w2_p, b2_p)

        return out_pad[:n_rows, :D].reshape(B, S, D)

    return apply


def _init_params(key, dim, mult):
    """Deterministic synthetic params mimicking nn.Linear's uniform init."""
    hidden = dim * mult
    k1, k2, k3, k4 = jax.random.split(key, 4)
    bound1 = 1.0 / jnp.sqrt(dim)
    w1 = jax.random.uniform(k1, (dim, 2 * hidden), jnp.float32, -bound1, bound1)
    b1 = jax.random.uniform(k2, (2 * hidden,), jnp.float32, -bound1, bound1)
    bound2 = 1.0 / jnp.sqrt(hidden)
    w2 = jax.random.uniform(k3, (hidden, dim), jnp.float32, -bound2, bound2)
    b2 = jax.random.uniform(k4, (dim,), jnp.float32, -bound2, bound2)
    return w1, b1, w2, b2


def _reference(x, w1, b1, w2, b2, *, approximate=False):
    h = x @ w1 + b1
    H = w2.shape[0]
    a, g = h[..., :H], h[..., H:]
    if approximate:
        c = 0.7978845608028654
        gelu_g = 0.5 * g * (1.0 + jnp.tanh(c * (g + 0.044715 * g ** 3)))
    else:
        gelu_g = 0.5 * g * (1.0 + lax.erf(g / jnp.sqrt(2.0)))
    return (a * gelu_g) @ w2 + b2


if __name__ == "__main__":
    key = jax.random.PRNGKey(0)
    k_x, k_p = jax.random.split(key)

    batch, seq, dim, mult = 2, 8, 32, 4  # hidden = 128
    x = jax.random.normal(k_x, (batch, seq, dim), jnp.float32)
    w1, b1, w2, b2 = _init_params(k_p, dim, mult)

    # Default (perf) path: tanh-approx GELU, bf16 MXU operands, f32 accumulation.
    ff_fast = make_feed_forward(w1, b1, w2, b2)  # weights prepared once, off hot path
    y = jax.block_until_ready(ff_fast(x))
    y_ref = _reference(x, w1, b1, w2, b2, approximate=True)
    assert y.shape == (batch, seq, dim)
    assert jnp.allclose(y, y_ref, atol=2e-2, rtol=2e-2), float(jnp.max(jnp.abs(y - y_ref)))

    # Spec-exact path: erf GELU (matches torch.nn.functional.gelu default).
    ff_exact = make_feed_forward(w1, b1, w2, b2, approximate_gelu=False)
    y2 = jax.block_until_ready(ff_exact(x))
    y2_ref = _reference(x, w1, b1, w2, b2, approximate=False)
    assert jnp.allclose(y2, y2_ref, atol=2e-2, rtol=2e-2), float(jnp.max(jnp.abs(y2 - y2_ref)))

    print("KERNEL_OK")
</pallas_src>

<mosaic_0001>
module attributes {stable_mosaic.version = 11 : i64} {
  func.func @_ff_kernel(%arg0: i32, %arg1: i32, %arg2: memref<16x128xbf16, #tpu.memory_space<vmem>>, %arg3: memref<128x128xbf16, #tpu.memory_space<vmem>>, %arg4: memref<128x128xbf16, #tpu.memory_space<vmem>>, %arg5: memref<1x128xf32, #tpu.memory_space<vmem>>, %arg6: memref<1x128xf32, #tpu.memory_space<vmem>>, %arg7: memref<128x128xbf16, #tpu.memory_space<vmem>>, %arg8: memref<1x128xf32, #tpu.memory_space<vmem>>, %arg9: memref<16x128xf32, #tpu.memory_space<vmem>>) attributes {dimension_semantics = [#tpu.dimension_semantics<parallel>, #tpu.dimension_semantics<arbitrary>], iteration_bounds = array<i64: 1, 1>, scalar_prefetch = 0 : i64, scratch_operands = 0 : i64, tpu.core_type = #tpu.core_type<tc>, window_params = [{transform_indices = @transform_0, window_bounds = array<i64: 16, 128>}, {transform_indices = @transform_1, window_bounds = array<i64: 128, 128>}, {transform_indices = @transform_2, window_bounds = array<i64: 128, 128>}, {transform_indices = @transform_3, window_bounds = array<i64: 1, 128>}, {transform_indices = @transform_4, window_bounds = array<i64: 1, 128>}, {transform_indices = @transform_5, window_bounds = array<i64: 128, 128>}, {pipeline_mode = #tpu.pipeline_mode<synchronous>, transform_indices = @transform_6, window_bounds = array<i64: 1, 128>}, {transform_indices = @transform_7, window_bounds = array<i64: 16, 128>}]} {
    %c0_i32 = arith.constant 0 : i32
    %0 = arith.cmpi eq, %arg1, %c0_i32 : i32
    %1 = arith.extui %0 : i1 to i32
    %c0_i32_0 = arith.constant 0 : i32
    %2 = arith.cmpi ne, %1, %c0_i32_0 : i32
    scf.if %2 {
      %c0_22 = arith.constant 0 : index
      %c0_23 = arith.constant 0 : index
      %34 = vector.load %arg8[%c0_22, %c0_23] : memref<1x128xf32, #tpu.memory_space<vmem>>, vector<1x128xf32>
      %35 = vector.shape_cast %34 : vector<1x128xf32> to vector<1x128xf32>
      %36 = vector.broadcast %35 : vector<1x128xf32> to vector<16x128xf32>
      %c0_24 = arith.constant 0 : index
      %c0_25 = arith.constant 0 : index
      %37 = vector.load %arg9[%c0_24, %c0_25] : memref<16x128xf32, #tpu.memory_space<vmem>>, vector<16x128xf32>
      tpu.vector_store %arg9[%c0_24, %c0_25], %36 {strides = array<i32>} : memref<16x128xf32, #tpu.memory_space<vmem>>, vector<16x128xf32>,
    } else {
    }
    %c0 = arith.constant 0 : index
    %c0_1 = arith.constant 0 : index
    %3 = vector.load %arg2[%c0, %c0_1] : memref<16x128xbf16, #tpu.memory_space<vmem>>, vector<16x128xbf16>
    %c0_2 = arith.constant 0 : index
    %c0_3 = arith.constant 0 : index
    %4 = vector.load %arg3[%c0_2, %c0_3] : memref<128x128xbf16, #tpu.memory_space<vmem>>, vector<128x128xbf16>
    %cst = arith.constant dense<0.000000e+00> : vector<16x128xf32>
    %5 = tpu.matmul %3, %4, %cst {dimension_numbers = #tpu.dot_dimension_numbers<[1], [0], [0], [1], [0, 0, 1, 1], [], []>} : vector<16x128xbf16>, vector<128x128xbf16>, vector<16x128xf32> -> vector<16x128xf32>
    %c0_4 = arith.constant 0 : index
    %c0_5 = arith.constant 0 : index
    %6 = vector.load %arg5[%c0_4, %c0_5] : memref<1x128xf32, #tpu.memory_space<vmem>>, vector<1x128xf32>
    %7 = vector.broadcast %6 : vector<1x128xf32> to vector<16x128xf32>
    %8 = arith.addf %5, %7 : vector<16x128xf32>
    %c0_6 = arith.constant 0 : index
    %c0_7 = arith.constant 0 : index
    %9 = vector.load %arg4[%c0_6, %c0_7] : memref<128x128xbf16, #tpu.memory_space<vmem>>, vector<128x128xbf16>
    %cst_8 = arith.constant dense<0.000000e+00> : vector<16x128xf32>
    %10 = tpu.matmul %3, %9, %cst_8 {dimension_numbers = #tpu.dot_dimension_numbers<[1], [0], [0], [1], [0, 0, 1, 1], [], []>} : vector<16x128xbf16>, vector<128x128xbf16>, vector<16x128xf32> -> vector<16x128xf32>
    %c0_9 = arith.constant 0 : index
    %c0_10 = arith.constant 0 : index
    %11 = vector.load %arg6[%c0_9, %c0_10] : memref<1x128xf32, #tpu.memory_space<vmem>>, vector<1x128xf32>
    %12 = vector.broadcast %11 : vector<1x128xf32> to vector<16x128xf32>
    %13 = arith.addf %10, %12 : vector<16x128xf32>
    %cst_11 = arith.constant 5.000000e-01 : f32
    %14 = vector.broadcast %cst_11 : f32 to vector<16x128xf32>
    %15 = arith.mulf %14, %13 : vector<16x128xf32>
    %cst_12 = arith.constant 4.471500e-02 : f32
    %16 = vector.broadcast %cst_12 : f32 to vector<16x128xf32>
    %17 = arith.mulf %16, %13 : vector<16x128xf32>
    %18 = arith.mulf %17, %13 : vector<16x128xf32>
    %19 = arith.mulf %18, %13 : vector<16x128xf32>
    %20 = arith.addf %13, %19 : vector<16x128xf32>
    %cst_13 = arith.constant 0.797884583 : f32
    %21 = vector.broadcast %cst_13 : f32 to vector<16x128xf32>
    %22 = arith.mulf %21, %20 : vector<16x128xf32>
    %23 = math.tanh %22 : vector<16x128xf32>
    %cst_14 = arith.constant 1.000000e+00 : f32
    %24 = vector.broadcast %cst_14 : f32 to vector<16x128xf32>
    %25 = arith.addf %24, %23 : vector<16x128xf32>
    %26 = arith.mulf %15, %25 : vector<16x128xf32>
    %27 = arith.mulf %8, %26 : vector<16x128xf32>
    %28 = arith.truncf %27 : vector<16x128xf32> to vector<16x128xbf16>
    %c0_15 = arith.constant 0 : index
    %c0_16 = arith.constant 0 : index
    %29 = vector.load %arg9[%c0_15, %c0_16] : memref<16x128xf32, #tpu.memory_space<vmem>>, vector<16x128xf32>
    %c0_17 = arith.constant 0 : index
    %c0_18 = arith.constant 0 : index
    %30 = vector.load %arg7[%c0_17, %c0_18] : memref<128x128xbf16, #tpu.memory_space<vmem>>, vector<128x128xbf16>
    %cst_19 = arith.constant dense<0.000000e+00> : vector<16x128xf32>
    %31 = tpu.matmul %28, %30, %cst_19 {dimension_numbers = #tpu.dot_dimension_numbers<[1], [0], [0], [1], [0, 0, 1, 1], [], []>} : vector<16x128xbf16>, vector<128x128xbf16>, vector<16x128xf32> -> vector<16x128xf32>
    %32 = arith.addf %29, %31 : vector<16x128xf32>
    %c0_20 = arith.constant 0 : index
    %c0_21 = arith.constant 0 : index
    %33 = vector.load %arg9[%c0_20, %c0_21] : memref<16x128xf32, #tpu.memory_space<vmem>>, vector<16x128xf32>
    tpu.vector_store %arg9[%c0_20, %c0_21], %32 {strides = array<i32>} : memref<16x128xf32, #tpu.memory_space<vmem>>, vector<16x128xf32>,
    return
  }
  func.func @transform_0(%arg0: i32, %arg1: i32) -> (i32, i32) {
    %c0_i32 = arith.constant 0 : i32
    %c0_i32_0 = arith.constant 0 : i32
    return %arg0, %c0_i32 : i32, i32
  }
  func.func @transform_1(%arg0: i32, %arg1: i32) -> (i32, i32) {
    %c0_i32 = arith.constant 0 : i32
    %c0_i32_0 = arith.constant 0 : i32
    return %c0_i32, %arg1 : i32, i32
  }
  func.func @transform_2(%arg0: i32, %arg1: i32) -> (i32, i32) {
    %c0_i32 = arith.constant 0 : i32
    %c0_i32_0 = arith.constant 0 : i32
    return %c0_i32, %arg1 : i32, i32
  }
  func.func @transform_3(%arg0: i32, %arg1: i32) -> (i32, i32) {
    %c0_i32 = arith.constant 0 : i32
    %c0_i32_0 = arith.constant 0 : i32
    return %c0_i32, %arg1 : i32, i32
  }
  func.func @transform_4(%arg0: i32, %arg1: i32) -> (i32, i32) {
    %c0_i32 = arith.constant 0 : i32
    %c0_i32_0 = arith.constant 0 : i32
    return %c0_i32, %arg1 : i32, i32
  }
  func.func @transform_5(%arg0: i32, %arg1: i32) -> (i32, i32) {
    %c0_i32 = arith.constant 0 : i32
    %c0_i32_0 = arith.constant 0 : i32
    return %arg1, %c0_i32 : i32, i32
  }
  func.func @transform_6(%arg0: i32, %arg1: i32) -> (i32, i32) {
    %c0_i32 = arith.constant 0 : i32
    %c0_i32_0 = arith.constant 0 : i32
    %c0_i32_1 = arith.constant 0 : i32
    return %c0_i32, %c0_i32_0 : i32, i32
  }
  func.func @transform_7(%arg0: i32, %arg1: i32) -> (i32, i32) {
    %c0_i32 = arith.constant 0 : i32
    %c0_i32_0 = arith.constant 0 : i32
    return %arg0, %c0_i32 : i32, i32
  }
}

</mosaic_0001>

<llo_original>
// kernel: tpu_custom_call.1
$region0: #{tpu_custom_call.1}
  #allocation0 [shape = 'u32[]', space=smem, size = 0x4, offset = 0x4, fixed_abs, tag = 'smem constant byte address 0x4 - core index']
  #allocation1 [shape = 'u32[144,128]{1,0:T(1,128)}', space=vmem, size = 0x12000, scoped, tag = 'internal scratch']
  %s0 = inlined_call_operand.hbm [shape: bf16[16,128], index: 0, kind: input, shape index: {}]
  %s1 = inlined_call_operand.hbm [shape: bf16[128,128], index: 1, kind: input, shape index: {}]
  %s2 = inlined_call_operand.hbm [shape: bf16[128,128], index: 2, kind: input, shape index: {}]
  %s3 = inlined_call_operand.vmem [shape: f32[1,128], index: 3, kind: input, shape index: {}]
  %s4 = inlined_call_operand.vmem [shape: f32[1,128], index: 4, kind: input, shape index: {}]
  %s5 = inlined_call_operand.hbm [shape: bf16[128,128], index: 5, kind: input, shape index: {}]
  %s6 = inlined_call_operand.vmem [shape: f32[1,128], index: 6, kind: input, shape index: {}]
  %s7 = inlined_call_operand.hbm [shape: f32[16,128], index: 7, kind: output, shape index: {}]
  %s8 = sld [smem:[#allocation0]]
  $region58: #{tpu_custom_call.1} parent=0
    _
  %s10 = ssub.s32 1, %s8
  %s11 = scalar_select 0, %s10, %s8
  $region1: #{tpu_custom_call.1} parent=0
    #allocation2 [shape = 'u8[4096]{0}', space=vmem, size = 0x1000, scoped, tag = 'input window, operand 0, single buffered']
    #allocation3 [shape = 's32[1]{0}', space=sflag, size = 0x4, scoped, tag = 'scoped memory for tpu_custom_call.1']
    #allocation4 [shape = 's32[1]{0}', space=sflag, size = 0x4, scoped, tag = 'scoped memory for tpu_custom_call.1']
    #allocation5 [shape = 'u8[32768]{0}', space=vmem, size = 0x8000, scoped, tag = 'input window, operand 1, single buffered']
    #allocation6 [shape = 's32[1]{0}', space=sflag, size = 0x4, scoped, tag = 'scoped memory for tpu_custom_call.1']
    #allocation7 [shape = 'u8[32768]{0}', space=vmem, size = 0x8000, scoped, tag = 'input window, operand 2, single buffered']
    #allocation8 [shape = 'u8[32768]{0}', space=vmem, size = 0x8000, scoped, tag = 'input window, operand 5, single buffered']
    #allocation9 [shape = 's32[1]{0}', space=sflag, size = 0x4, scoped, tag = 'scoped memory for tpu_custom_call.1']
    #allocation10 [shape = 'u8[8192]{0}', space=vmem, size = 0x2000, scoped, tag = 'output window, operand 0, single buffered']
    %12 = vsyncpa [#allocation3], 0
    %13 = vsyncpa [#allocation6], 0
    %14 = vsyncpa [#allocation9], 0
    %15 = vsyncpa [#allocation4], 0
    // Predicated region
    $region2: #{tpu_custom_call.1} parent=1 // pred_check
      _
    $region3: #{tpu_custom_call.1} parent=1 // pred_check_branch
      %17 = sbr.rel (0) target = $region5
    $region4: #{tpu_custom_call.1} parent=1 // pred_region
      %s19 = ssub.s32 128, 128
      %20 = vsyncadd [#allocation3], %s19
      %s21 = sshll.u32 [#allocation2], 4
      %s22 = int_to_ptr.vmem [resolvable:$true] %s21
      %27 = dma.hbm_to_vmem [thread:$0]  %s0, 128, %s22, [#allocation3], 64, 64, 4
    $region5: #{tpu_custom_call.1} parent=1 // pred_fallthru
      _
    // Predicated region
    $region6: #{tpu_custom_call.1} parent=1 // pred_check
      _
    $region7: #{tpu_custom_call.1} parent=1 // pred_check_branch
      %29 = sbr.rel (0) target = $region9
    $region8: #{tpu_custom_call.1} parent=1 // pred_region
      %s31 = ssub.s32 1024, 1024
      %32 = vsyncadd [#allocation6], %s31
      %s33 = sshll.u32 [#allocation5], 4
      %s34 = int_to_ptr.vmem [resolvable:$true] %s33
      %39 = dma.hbm_to_vmem [thread:$0]  %s1, 1024, %s34, [#allocation6], 64, 64, 4
    $region9: #{tpu_custom_call.1} parent=1 // pred_fallthru
      _
    // Predicated region
    $region10: #{tpu_custom_call.1} parent=1 // pred_check
      _
    $region11: #{tpu_custom_call.1} parent=1 // pred_check_branch
      %41 = sbr.rel (0) target = $region13
    $region12: #{tpu_custom_call.1} parent=1 // pred_region
      %s43 = ssub.s32 1024, 1024
      %44 = vsyncadd [#allocation6], %s43
      %s45 = sshll.u32 [#allocation7], 4
      %s46 = int_to_ptr.vmem [resolvable:$true] %s45
      %51 = dma.hbm_to_vmem [thread:$0]  %s2, 1024, %s46, [#allocation6], 64, 64, 4
    $region13: #{tpu_custom_call.1} parent=1 // pred_fallthru
      _
    // Predicated region
    $region14: #{tpu_custom_call.1} parent=1 // pred_check
      _
    $region15: #{tpu_custom_call.1} parent=1 // pred_check_branch
      %53 = sbr.rel (0) target = $region17
    $region16: #{tpu_custom_call.1} parent=1 // pred_region
      _
    $region17: #{tpu_custom_call.1} parent=1 // pred_fallthru
      _
    // Predicated region
    $region18: #{tpu_custom_call.1} parent=1 // pred_check
      _
    $region19: #{tpu_custom_call.1} parent=1 // pred_check_branch
      %55 = sbr.rel (0) target = $region21
    $region20: #{tpu_custom_call.1} parent=1 // pred_region
      _
    $region21: #{tpu_custom_call.1} parent=1 // pred_fallthru
      _
    // Predicated region
    $region22: #{tpu_custom_call.1} parent=1 // pred_check
      _
    $region23: #{tpu_custom_call.1} parent=1 // pred_check_branch
      %57 = sbr.rel (0) target = $region25
    $region24: #{tpu_custom_call.1} parent=1 // pred_region
      %s59 = ssub.s32 1024, 1024
      %60 = vsyncadd [#allocation9], %s59
      %s61 = sshll.u32 [#allocation8], 4
      %s62 = int_to_ptr.vmem [resolvable:$true] %s61
      %67 = dma.hbm_to_vmem [thread:$0]  %s5, 1024, %s62, [#allocation9], 64, 64, 4
    $region25: #{tpu_custom_call.1} parent=1 // pred_fallthru
      _
    // Predicated region
    $region26: #{tpu_custom_call.1} parent=1 // pred_check
      _
    $region27: #{tpu_custom_call.1} parent=1 // pred_check_branch
      %69 = sbr.rel (0) target = $region29
    $region28: #{tpu_custom_call.1} parent=1 // pred_region
      _
    $region29: #{tpu_custom_call.1} parent=1 // pred_fallthru
      _
    // Predicated region
    $region30: #{tpu_custom_call.1} parent=1 // pred_check
      _
    $region31: #{tpu_custom_call.1} parent=1 // pred_check_branch
      %71 = sbr.rel (0) target = $region33
    $region32: #{tpu_custom_call.1} parent=1 // pred_region
      %72 = dma.done [#allocation3], 128
    $region33: #{tpu_custom_call.1} parent=1 // pred_fallthru
      _
    // Predicated region
    $region34: #{tpu_custom_call.1} parent=1 // pred_check
      _
    $region35: #{tpu_custom_call.1} parent=1 // pred_check_branch
      %74 = sbr.rel (0) target = $region37
    $region36: #{tpu_custom_call.1} parent=1 // pred_region
      %75 = dma.done [#allocation6], 1024
    $region37: #{tpu_custom_call.1} parent=1 // pred_fallthru
      _
    // Predicated region
    $region38: #{tpu_custom_call.1} parent=1 // pred_check
      _
    $region39: #{tpu_custom_call.1} parent=1 // pred_check_branch
      %77 = sbr.rel (0) target = $region41
    $region40: #{tpu_custom_call.1} parent=1 // pred_region
      %78 = dma.done [#allocation6], 1024
    $region41: #{tpu_custom_call.1} parent=1 // pred_fallthru
      _
    // Predicated region
    $region42: #{tpu_custom_call.1} parent=1 // pred_check
      _
    $region43: #{tpu_custom_call.1} parent=1 // pred_check_branch
      %80 = sbr.rel (0) target = $region45
    $region44: #{tpu_custom_call.1} parent=1 // pred_region
      %81 = dma.done [#allocation9], 1024
    $region45: #{tpu_custom_call.1} parent=1 // pred_fallthru
      _
    %p83 = scmp.eq.s32.totalorder 0, 0
    // Predicated region
    $region46: #{tpu_custom_call.1} parent=1 // pred_check
      %p84 = pneg %p83
    $region47: #{tpu_custom_call.1} parent=1 // pred_check_branch
      %86 = sbr.rel (%p84) target = $region49
    $region48: #{tpu_custom_call.1} parent=1 // pred_region
      %v87 = vld [vmem:[%s6] sm:$0x1]
      %v89 = vlaneseq
      %v90 = vshrl.u32 %v89, 7
      %v91 = vsub.s32 0, %v90
      %v92 = vrot.slane %v87, %v91
      %94 = vst [vmem:[#allocation10] sm:$0xff] %v92
      %95 = vst [vmem:[#allocation10 + $0x8] sm:$0xff] %v92
    $region49: #{tpu_custom_call.1} parent=1 // pred_fallthru
      _
    %v96 = vld [vmem:[#allocation2] sm:$0xf]
    %v97 = vld [vmem:[#allocation2 + $0x4] sm:$0xf]
    %v98 = vld [vmem:[#allocation5] sm:$0xf]
    %v99 = vld [vmem:[#allocation5 + $0x4] sm:$0xf]
    %v100 = vld [vmem:[#allocation5 + $0x8] sm:$0xf]
    %v101 = vld [vmem:[#allocation5 + $0xc] sm:$0xf]
    %v102 = vld [vmem:[#allocation5 + $0x10] sm:$0xf]
    %v103 = vld [vmem:[#allocation5 + $0x14] sm:$0xf]
    %v104 = vld [vmem:[#allocation5 + $0x18] sm:$0xf]
    %v105 = vld [vmem:[#allocation5 + $0x1c] sm:$0xf]
    %v106 = vld [vmem:[#allocation5 + $0x20] sm:$0xf]
    %v107 = vld [vmem:[#allocation5 + $0x24] sm:$0xf]
    %v108 = vld [vmem:[#allocation5 + $0x28] sm:$0xf]
    %v109 = vld [vmem:[#allocation5 + $0x2c] sm:$0xf]
    %v110 = vld [vmem:[#allocation5 + $0x30] sm:$0xf]
    %v111 = vld [vmem:[#allocation5 + $0x34] sm:$0xf]
    %v112 = vld [vmem:[#allocation5 + $0x38] sm:$0xf]
    %v113 = vld [vmem:[#allocation5 + $0x3c] sm:$0xf]
    %v114 = vld [vmem:[%s3] sm:$0x1]
    %v116 = vlaneseq
    %v117 = vshrl.u32 %v116, 7
    %v118 = vsub.s32 0, %v117
    %v119 = vrot.slane %v114, %v118
    %v123 = vunpack.c.l.b16 %v96
    %v124 = vunpack.c.l.b16 %v97
    %v125 = vpack.c.b16 %v124, %v123
    %v143 = vunpack.c.l.b16 %v98
    %v144 = vunpack.c.l.b16 %v99
    %v145 = vunpack.c.l.b16 %v100
    %v146 = vunpack.c.l.b16 %v101
    %v147 = vunpack.c.l.b16 %v102
    %v148 = vunpack.c.l.b16 %v103
    %v149 = vunpack.c.l.b16 %v104
    %v150 = vunpack.c.l.b16 %v105
    %v151 = vunpack.c.l.b16 %v106
    %v152 = vunpack.c.l.b16 %v107
    %v153 = vunpack.c.l.b16 %v108
    %v154 = vunpack.c.l.b16 %v109
    %v155 = vunpack.c.l.b16 %v110
    %v156 = vunpack.c.l.b16 %v111
    %v157 = vunpack.c.l.b16 %v112
    %v158 = vunpack.c.l.b16 %v113
    %v159 = vpack.c.b16 %v144, %v143
    %v160 = vpack.c.b16 %v146, %v145
    %v161 = vpack.c.b16 %v148, %v147
    %v162 = vpack.c.b16 %v150, %v149
    %v163 = vpack.c.b16 %v152, %v151
    %v164 = vpack.c.b16 %v154, %v153
    %v165 = vpack.c.b16 %v156, %v155
    %v166 = vpack.c.b16 %v158, %v157
    %175 = vmatprep.subr.bf16.mxu0 0
    %176 = vmatpush1.bf16.msra.mxu0 %v159
    %177 = vmatprep.subr.bf16.mxu0 0
    %178 = vmatpush1.bf16.msra.mxu0 %v160
    %179 = vmatprep.subr.bf16.mxu0 0
    %180 = vmatpush1.bf16.msra.mxu0 %v161
    %181 = vmatprep.subr.bf16.mxu0 0
    %182 = vmatpush1.bf16.msra.mxu0 %v162
    %183 = vmatprep.subr.bf16.mxu0 0
    %184 = vmatpush1.bf16.msra.mxu0 %v163
    %185 = vmatprep.subr.bf16.mxu0 0
    %186 = vmatpush1.bf16.msra.mxu0 %v164
    %187 = vmatprep.subr.bf16.mxu0 0
    %188 = vmatpush1.bf16.msra.mxu0 %v165
    %189 = vmatprep.subr.bf16.mxu0 0
    %190 = vmatpush1.bf16.msra.mxu0 %v166
    %191 = vmatprep.subr.bf16.mxu0 0
    %192 = vmatpush1.bf16.msra.mxu0 0
    %193 = vmatprep.subr.bf16.mxu0 0
    %194 = vmatpush1.bf16.msra.mxu0 0
    %195 = vmatprep.subr.bf16.mxu0 0
    %196 = vmatpush1.bf16.msra.mxu0 0
    %197 = vmatprep.subr.bf16.mxu0 0
    %198 = vmatpush1.bf16.msra.mxu0 0
    %199 = vmatprep.subr.bf16.mxu0 0
    %200 = vmatpush1.bf16.msra.mxu0 0
    %201 = vmatprep.subr.bf16.mxu0 0
    %202 = vmatpush1.bf16.msra.mxu0 0
    %203 = vmatprep.subr.bf16.mxu0 0
    %204 = vmatpush1.bf16.msra.mxu0 0
    %205 = vmatprep.subr.bf16.mxu0 0
    %206 = vmatpush1.bf16.msra.mxu0 0
    %207 = vmatprep.mubr.bf16.mxu0 0
    %208 = vmatmul.mubr.bf16.gmra.mrb[0].mxu0 %v125
    %v209 = vpop.f32.mrb[0].mxu0
    %v210 = vadd.f32 %v119, %v209
    %v211 = vpop.f32.mrb[0].mxu0
    %v212 = vpop.f32.mrb[0].mxu0
    %v213 = vadd.f32 %v119, %v212
    %v214 = vpop.f32.mrb[0].mxu0
    %215 = vdwg.mxu0
    %v216 = vld [vmem:[#allocation7] sm:$0xf]
    %v217 = vld [vmem:[#allocation7 + $0x4] sm:$0xf]
    %v218 = vld [vmem:[#allocation7 + $0x8] sm:$0xf]
    %v219 = vld [vmem:[#allocation7 + $0xc] sm:$0xf]
    %v220 = vld [vmem:[#allocation7 + $0x10] sm:$0xf]
    %v221 = vld [vmem:[#allocation7 + $0x14] sm:$0xf]
    %v222 = vld [vmem:[#allocation7 + $0x18] sm:$0xf]
    %v223 = vld [vmem:[#allocation7 + $0x1c] sm:$0xf]
    %v224 = vld [vmem:[#allocation7 + $0x20] sm:$0xf]
    %v225 = vld [vmem:[#allocation7 + $0x24] sm:$0xf]
    %v226 = vld [vmem:[#allocation7 + $0x28] sm:$0xf]
    %v227 = vld [vmem:[#allocation7 + $0x2c] sm:$0xf]
    %v228 = vld [vmem:[#allocation7 + $0x30] sm:$0xf]
    %v229 = vld [vmem:[#allocation7 + $0x34] sm:$0xf]
    %v230 = vld [vmem:[#allocation7 + $0x38] sm:$0xf]
    %v231 = vld [vmem:[#allocation7 + $0x3c] sm:$0xf]
    %v232 = vld [vmem:[%s4] sm:$0x1]
    %v234 = vlaneseq
    %v235 = vshrl.u32 %v234, 7
    %v236 = vsub.s32 0, %v235
    %v237 = vrot.slane %v232, %v236
    %v255 = vunpack.c.l.b16 %v216
    %v256 = vunpack.c.l.b16 %v217
    %v257 = vunpack.c.l.b16 %v218
    %v258 = vunpack.c.l.b16 %v219
    %v259 = vunpack.c.l.b16 %v220
    %v260 = vunpack.c.l.b16 %v221
    %v261 = vunpack.c.l.b16 %v222
    %v262 = vunpack.c.l.b16 %v223
    %v263 = vunpack.c.l.b16 %v224
    %v264 = vunpack.c.l.b16 %v225
    %v265 = vunpack.c.l.b16 %v226
    %v266 = vunpack.c.l.b16 %v227
    %v267 = vunpack.c.l.b16 %v228
    %v268 = vunpack.c.l.b16 %v229
    %v269 = vunpack.c.l.b16 %v230
    %v270 = vunpack.c.l.b16 %v231
    %v271 = vpack.c.b16 %v256, %v255
    %v272 = vpack.c.b16 %v258, %v257
    %v273 = vpack.c.b16 %v260, %v259
    %v274 = vpack.c.b16 %v262, %v261
    %v275 = vpack.c.b16 %v264, %v263
    %v276 = vpack.c.b16 %v266, %v265
    %v277 = vpack.c.b16 %v268, %v267
    %v278 = vpack.c.b16 %v270, %v269
    %287 = vmatprep.subr.bf16.mxu0 0
    %288 = vmatpush1.bf16.msra.mxu0 %v271
    %289 = vmatprep.subr.bf16.mxu0 0
    %290 = vmatpush1.bf16.msra.mxu0 %v272
    %291 = vmatprep.subr.bf16.mxu0 0
    %292 = vmatpush1.bf16.msra.mxu0 %v273
    %293 = vmatprep.subr.bf16.mxu0 0
    %294 = vmatpush1.bf16.msra.mxu0 %v274
    %295 = vmatprep.subr.bf16.mxu0 0
    %296 = vmatpush1.bf16.msra.mxu0 %v275
    %297 = vmatprep.subr.bf16.mxu0 0
    %298 = vmatpush1.bf16.msra.mxu0 %v276
    %299 = vmatprep.subr.bf16.mxu0 0
    %300 = vmatpush1.bf16.msra.mxu0 %v277
    %301 = vmatprep.subr.bf16.mxu0 0
    %302 = vmatpush1.bf16.msra.mxu0 %v278
    %303 = vmatprep.subr.bf16.mxu0 0
    %304 = vmatpush1.bf16.msra.mxu0 0
    %305 = vmatprep.subr.bf16.mxu0 0
    %306 = vmatpush1.bf16.msra.mxu0 0
    %307 = vmatprep.subr.bf16.mxu0 0
    %308 = vmatpush1.bf16.msra.mxu0 0
    %309 = vmatprep.subr.bf16.mxu0 0
    %310 = vmatpush1.bf16.msra.mxu0 0
    %311 = vmatprep.subr.bf16.mxu0 0
    %312 = vmatpush1.bf16.msra.mxu0 0
    %313 = vmatprep.subr.bf16.mxu0 0
    %314 = vmatpush1.bf16.msra.mxu0 0
    %315 = vmatprep.subr.bf16.mxu0 0
    %316 = vmatpush1.bf16.msra.mxu0 0
    %317 = vmatprep.subr.bf16.mxu0 0
    %318 = vmatpush1.bf16.msra.mxu0 0
    %319 = vmatprep.mubr.bf16.mxu0 0
    %320 = vmatmul.mubr.bf16.gmra.mrb[0].mxu0 %v125
    %v321 = vpop.f32.mrb[0].mxu0
    %v322 = vadd.f32 %v237, %v321
    %v323 = vpop.f32.mrb[0].mxu0
    %v324 = vpop.f32.mrb[0].mxu0
    %v325 = vadd.f32 %v237, %v324
    %v326 = vpop.f32.mrb[0].mxu0
    %327 = vdwg.mxu0
    %v328 = vmul.f32 %v322, 0.5
    %v329 = vmul.f32 %v325, 0.5
    %v330 = vmul.f32 %v322, 0.044715
    %v331 = vmul.f32 %v325, 0.044715
    %v332 = vmul.f32 %v330, %v322
    %v333 = vmul.f32 %v331, %v325
    %v334 = vmul.f32 %v332, %v322
    %v335 = vmul.f32 %v333, %v325
    %v336 = vadd.f32 %v322, %v334
    %v337 = vadd.f32 %v325, %v335
    %v338 = vmul.f32 %v336, 0.7978846
    %v339 = vmul.f32 %v337, 0.7978846
    %v340 = vtanh.pop %v338
    %v341 = vtanh.pop %v339
    %v342 = vadd.f32 %v340, 1.0
    %v343 = vadd.f32 %v341, 1.0
    %v344 = vmul.f32 %v328, %v342
    %v345 = vmul.f32 %v329, %v343
    %v346 = vmul.f32 %v210, %v344
    %v347 = vmul.f32 %v213, %v345
    %v348 = vpack.c.bf16 %v347, %v346
    %v349 = vld [vmem:[#allocation10] sm:$0xff]
    %v350 = vld [vmem:[#allocation10 + $0x8] sm:$0xff]
    %v351 = vld [vmem:[#allocation8] sm:$0xf]
    %v352 = vld [vmem:[#allocation8 + $0x4] sm:$0xf]
    %v353 = vld [vmem:[#allocation8 + $0x8] sm:$0xf]
    %v354 = vld [vmem:[#allocation8 + $0xc] sm:$0xf]
    %v355 = vld [vmem:[#allocation8 + $0x10] sm:$0xf]
    %v356 = vld [vmem:[#allocation8 + $0x14] sm:$0xf]
    %v357 = vld [vmem:[#allocation8 + $0x18] sm:$0xf]
    %v358 = vld [vmem:[#allocation8 + $0x1c] sm:$0xf]
    %v359 = vld [vmem:[#allocation8 + $0x20] sm:$0xf]
    %v360 = vld [vmem:[#allocation8 + $0x24] sm:$0xf]
    %v361 = vld [vmem:[#allocation8 + $0x28] sm:$0xf]
    %v362 = vld [vmem:[#allocation8 + $0x2c] sm:$0xf]
    %v363 = vld [vmem:[#allocation8 + $0x30] sm:$0xf]
    %v364 = vld [vmem:[#allocation8 + $0x34] sm:$0xf]
    %v365 = vld [vmem:[#allocation8 + $0x38] sm:$0xf]
    %v366 = vld [vmem:[#allocation8 + $0x3c] sm:$0xf]
    %v383 = vunpack.c.l.b16 %v351
    %v384 = vunpack.c.l.b16 %v352
    %v385 = vunpack.c.l.b16 %v353
    %v386 = vunpack.c.l.b16 %v354
    %v387 = vunpack.c.l.b16 %v355
    %v388 = vunpack.c.l.b16 %v356
    %v389 = vunpack.c.l.b16 %v357
    %v390 = vunpack.c.l.b16 %v358
    %v391 = vunpack.c.l.b16 %v359
    %v392 = vunpack.c.l.b16 %v360
    %v393 = vunpack.c.l.b16 %v361
    %v394 = vunpack.c.l.b16 %v362
    %v395 = vunpack.c.l.b16 %v363
    %v396 = vunpack.c.l.b16 %v364
    %v397 = vunpack.c.l.b16 %v365
    %v398 = vunpack.c.l.b16 %v366
    %v399 = vpack.c.b16 %v384, %v383
    %v400 = vpack.c.b16 %v386, %v385
    %v401 = vpack.c.b16 %v388, %v387
    %v402 = vpack.c.b16 %v390, %v389
    %v403 = vpack.c.b16 %v392, %v391
    %v404 = vpack.c.b16 %v394, %v393
    %v405 = vpack.c.b16 %v396, %v395
    %v406 = vpack.c.b16 %v398, %v397
    %415 = vmatprep.subr.bf16.mxu0 0
    %416 = vmatpush1.bf16.msra.mxu0 %v399
    %417 = vmatprep.subr.bf16.mxu0 0
    %418 = vmatpush1.bf16.msra.mxu0 %v400
    %419 = vmatprep.subr.bf16.mxu0 0
    %420 = vmatpush1.bf16.msra.mxu0 %v401
    %421 = vmatprep.subr.bf16.mxu0 0
    %422 = vmatpush1.bf16.msra.mxu0 %v402
    %423 = vmatprep.subr.bf16.mxu0 0
    %424 = vmatpush1.bf16.msra.mxu0 %v403
    %425 = vmatprep.subr.bf16.mxu0 0
    %426 = vmatpush1.bf16.msra.mxu0 %v404
    %427 = vmatprep.subr.bf16.mxu0 0
    %428 = vmatpush1.bf16.msra.mxu0 %v405
    %429 = vmatprep.subr.bf16.mxu0 0
    %430 = vmatpush1.bf16.msra.mxu0 %v406
    %431 = vmatprep.subr.bf16.mxu0 0
    %432 = vmatpush1.bf16.msra.mxu0 0
    %433 = vmatprep.subr.bf16.mxu0 0
    %434 = vmatpush1.bf16.msra.mxu0 0
    %435 = vmatprep.subr.bf16.mxu0 0
    %436 = vmatpush1.bf16.msra.mxu0 0
    %437 = vmatprep.subr.bf16.mxu0 0
    %438 = vmatpush1.bf16.msra.mxu0 0
    %439 = vmatprep.subr.bf16.mxu0 0
    %440 = vmatpush1.bf16.msra.mxu0 0
    %441 = vmatprep.subr.bf16.mxu0 0
    %442 = vmatpush1.bf16.msra.mxu0 0
    %443 = vmatprep.subr.bf16.mxu0 0
    %444 = vmatpush1.bf16.msra.mxu0 0
    %445 = vmatprep.subr.bf16.mxu0 0
    %446 = vmatpush1.bf16.msra.mxu0 0
    %447 = vmatprep.mubr.bf16.mxu0 0
    %448 = vmatmul.mubr.bf16.gmra.mrb[0].mxu0 %v348
    %v449 = vpop.f32.mrb[0].mxu0
    %v450 = vadd.f32 0.0, %v449
    %v451 = vpop.f32.mrb[0].mxu0
    %v452 = vpop.f32.mrb[0].mxu0
    %v453 = vadd.f32 0.0, %v452
    %v454 = vpop.f32.mrb[0].mxu0
    %455 = vdwg.mxu0
    %v456 = vadd.f32 %v349, %v450
    %v457 = vadd.f32 %v350, %v453
    %458 = vst [vmem:[#allocation10] sm:$0xff] %v456
    %459 = vst [vmem:[#allocation10 + $0x8] sm:$0xff] %v457
    // Predicated region
    $region50: #{tpu_custom_call.1} parent=1 // pred_check
      _
    $region51: #{tpu_custom_call.1} parent=1 // pred_check_branch
      %461 = sbr.rel (0) target = $region53
    $region52: #{tpu_custom_call.1} parent=1 // pred_region
      %s463 = ssub.s32 256, 256
      %464 = vsyncadd [#allocation4], %s463
      %s465 = sshll.u32 [#allocation10], 4
      %s466 = int_to_ptr.vmem [resolvable:$true] %s465
      %471 = dma.vmem_to_hbm [thread:$0]  %s466, 256, %s7, [#allocation4], 128, 128, 8
    $region53: #{tpu_custom_call.1} parent=1 // pred_fallthru
      _
    // Predicated region
    $region54: #{tpu_custom_call.1} parent=1 // pred_check
      _
    $region55: #{tpu_custom_call.1} parent=1 // pred_check_branch
      %473 = sbr.rel (0) target = $region57
    $region56: #{tpu_custom_call.1} parent=1 // pred_region
      %474 = dma.done [#allocation4], 256
    $region57: #{tpu_custom_call.1} parent=1 // pred_fallthru
      _
    %475 = vsyncpa [#allocation3], 1
    %476 = vsyncpa [#allocation6], 1
    %477 = vsyncpa [#allocation9], 1
    %478 = vsyncpa [#allocation4], 1

</llo_original>
